<compile_context>
chip_gen: v7x
topology: tpu7x:2x2x1
jax: 0.10.0
libtpu: 0.0.40
codegen_flags: <defaults>
</compile_context>

<pallas_src>
import functools

import jax
import jax.numpy as jnp
from jax.experimental import pallas as pl
from jax.experimental.pallas import tpu as pltpu


def _round_up(x, m):
    return ((x + m - 1) // m) * m


def _encode_mlp_kernel(x_ref, w1_ref, b1_ref, w2_ref, b2_ref, out_ref,
                       *, compute_dtype):
    x = x_ref[...]
    w1 = w1_ref[...]
    w2 = w2_ref[...]
    if compute_dtype != jnp.float32:
        # Feed narrow operands to the MXU, accumulate in f32.
        x = x.astype(compute_dtype)
        w1 = w1.astype(compute_dtype)
        w2 = w2.astype(compute_dtype)

    # fc1: (TB, In_p) @ (In_p, H_p) + (1, H_p), f32 accumulation.
    h = jnp.dot(x, w1, preferred_element_type=jnp.float32) + b1_ref[...]
    # LeakyReLU (negative_slope = 0.01, matches nn.LeakyReLU()), in f32 on VPU.
    h = jnp.maximum(h, 0.01 * h)
    if compute_dtype != jnp.float32:
        h = h.astype(compute_dtype)

    # fc2: (TB, H_p) @ (H_p, Out_p) + (1, Out_p), f32 accumulation.
    o = jnp.dot(h, w2, preferred_element_type=jnp.float32) + b2_ref[...]
    out_ref[...] = o.astype(out_ref.dtype)


def encode_mlp(x, w1, b1, w2, b2, *, block_b=256, compute_dtype=jnp.float32):
    """x: (B, In); w1: (In, H); b1: (H,); w2: (H, Out); b2: (Out,)."""
    B, In = x.shape
    H = w1.shape[1]
    Out = w2.shape[1]

    # Lane-dense / MXU-friendly padding: all feature dims -> multiples of 128.
    In_p = _round_up(In, 128)
    H_p = _round_up(H, 128)
    Out_p = _round_up(Out, 128)

    # Batch tile: sublane-aligned, capped at block_b; pad B to a multiple.
    TB = min(block_b, _round_up(B, 8))
    B_p = _round_up(B, TB)

    x_p = jnp.pad(x, ((0, B_p - B), (0, In_p - In)))
    w1_p = jnp.pad(w1, ((0, In_p - In), (0, H_p - H)))
    b1_p = jnp.pad(b1, (0, H_p - H)).reshape(1, H_p)
    w2_p = jnp.pad(w2, ((0, H_p - H), (0, Out_p - Out)))
    b2_p = jnp.pad(b2, (0, Out_p - Out)).reshape(1, Out_p)

    grid = (B_p // TB,)

    # VMEM budget (f32 bytes): double-buffered streaming x/out tiles,
    # resident weights/biases (assume they may also be double-buffered),
    # plus the h intermediate.  Clamp to a range safe on v5e/v6e/v7x.
    f32b = 4
    needed = (
        2 * TB * In_p * f32b            # x tiles (double-buffered)
        + 2 * TB * Out_p * f32b         # out tiles (double-buffered)
        + 2 * (In_p * H_p + H_p) * f32b  # w1 + b1
        + 2 * (H_p * Out_p + Out_p) * f32b  # w2 + b2
        + TB * H_p * f32b               # h intermediate / spills
    )
    vmem_limit = int(min(max(needed + (8 << 20), 32 << 20), 120 << 20))

    kernel = functools.partial(_encode_mlp_kernel, compute_dtype=compute_dtype)

    out_p = pl.pallas_call(
        kernel,
        out_shape=jax.ShapeDtypeStruct((B_p, Out_p), x.dtype),
        grid_spec=pltpu.PrefetchScalarGridSpec(
            num_scalar_prefetch=0,
            grid=grid,
            in_specs=[
                pl.BlockSpec((TB, In_p), lambda i: (i, 0)),    # streams per tile
                pl.BlockSpec((In_p, H_p), lambda i: (0, 0)),   # resident
                pl.BlockSpec((1, H_p), lambda i: (0, 0)),      # resident
                pl.BlockSpec((H_p, Out_p), lambda i: (0, 0)),  # resident
                pl.BlockSpec((1, Out_p), lambda i: (0, 0)),    # resident
            ],
            out_specs=pl.BlockSpec((TB, Out_p), lambda i: (i, 0)),
        ),
        compiler_params=pltpu.CompilerParams(
            dimension_semantics=("parallel",),   # batch tiles are independent
            vmem_limit_bytes=vmem_limit,
        ),
    )(x_p, w1_p, b1_p, w2_p, b2_p)

    # Slice off batch / lane padding.
    return out_p[:B, :Out]


def _torch_linear_init(key, fan_in, fan_out):
    """Mimic torch.nn.Linear default init: U(-1/sqrt(fan_in), 1/sqrt(fan_in))."""
    kw, kb = jax.random.split(key)
    bound = 1.0 / jnp.sqrt(float(fan_in))
    # stored pre-transposed: (fan_in, fan_out)
    w = jax.random.uniform(kw, (fan_in, fan_out), jnp.float32, -bound, bound)
    b = jax.random.uniform(kb, (fan_out,), jnp.float32, -bound, bound)
    return w, b


def _reference(x, w1, b1, w2, b2):
    h = x @ w1 + b1
    h = jnp.maximum(h, 0.01 * h)
    return h @ w2 + b2


if __name__ == "__main__":
    key = jax.random.PRNGKey(0)
    k_x, k_x2, k_fc1, k_fc2 = jax.random.split(key, 4)

    # Small shapes consistent with encodeMLP(input_size, output_size, hidden_size)
    batch, input_size, hidden_size, output_size = 8, 32, 64, 16

    x = jax.random.normal(k_x, (batch, input_size), jnp.float32)
    w1, b1 = _torch_linear_init(k_fc1, input_size, hidden_size)
    w2, b2 = _torch_linear_init(k_fc2, hidden_size, output_size)

    out = jax.block_until_ready(encode_mlp(x, w1, b1, w2, b2))
    ref = _reference(x, w1, b1, w2, b2)
    assert out.shape == (batch, output_size)
    assert jnp.allclose(out, ref, atol=1e-4, rtol=1e-4)

    # Second check: non-multiple batch to exercise batch tiling + padding path.
    batch2 = 300
    x2 = jax.random.normal(k_x2, (batch2, input_size), jnp.float32)
    out2 = jax.block_until_ready(encode_mlp(x2, w1, b1, w2, b2))
    ref2 = _reference(x2, w1, b1, w2, b2)
    assert out2.shape == (batch2, output_size)
    assert jnp.allclose(out2, ref2, atol=1e-4, rtol=1e-4)

    print("KERNEL_OK")
</pallas_src>

<mosaic_0001>
module attributes {stable_mosaic.version = 11 : i64} {
  func.func @_encode_mlp_kernel(%arg0: i32, %arg1: memref<8x128xf32, #tpu.memory_space<vmem>>, %arg2: memref<128x128xf32, #tpu.memory_space<vmem>>, %arg3: memref<1x128xf32, #tpu.memory_space<vmem>>, %arg4: memref<128x128xf32, #tpu.memory_space<vmem>>, %arg5: memref<1x128xf32, #tpu.memory_space<vmem>>, %arg6: memref<8x128xf32, #tpu.memory_space<vmem>>) attributes {dimension_semantics = [#tpu.dimension_semantics<parallel>], iteration_bounds = array<i64: 1>, scalar_prefetch = 0 : i64, scratch_operands = 0 : i64, tpu.core_type = #tpu.core_type<tc>, window_params = [{transform_indices = @transform_0, window_bounds = array<i64: 8, 128>}, {pipeline_mode = #tpu.pipeline_mode<synchronous>, transform_indices = @transform_1, window_bounds = array<i64: 128, 128>}, {pipeline_mode = #tpu.pipeline_mode<synchronous>, transform_indices = @transform_2, window_bounds = array<i64: 1, 128>}, {pipeline_mode = #tpu.pipeline_mode<synchronous>, transform_indices = @transform_3, window_bounds = array<i64: 128, 128>}, {pipeline_mode = #tpu.pipeline_mode<synchronous>, transform_indices = @transform_4, window_bounds = array<i64: 1, 128>}, {transform_indices = @transform_5, window_bounds = array<i64: 8, 128>}]} {
    %c0 = arith.constant 0 : index
    %c0_0 = arith.constant 0 : index
    %0 = vector.load %arg1[%c0, %c0_0] : memref<8x128xf32, #tpu.memory_space<vmem>>, vector<8x128xf32>
    %c0_1 = arith.constant 0 : index
    %c0_2 = arith.constant 0 : index
    %1 = vector.load %arg2[%c0_1, %c0_2] : memref<128x128xf32, #tpu.memory_space<vmem>>, vector<128x128xf32>
    %c0_3 = arith.constant 0 : index
    %c0_4 = arith.constant 0 : index
    %2 = vector.load %arg4[%c0_3, %c0_4] : memref<128x128xf32, #tpu.memory_space<vmem>>, vector<128x128xf32>
    %cst = arith.constant dense<0.000000e+00> : vector<8x128xf32>
    %3 = tpu.matmul %0, %1, %cst {dimension_numbers = #tpu.dot_dimension_numbers<[1], [0], [0], [1], [0, 0, 1, 1], [], []>} : vector<8x128xf32>, vector<128x128xf32>, vector<8x128xf32> -> vector<8x128xf32>
    %c0_5 = arith.constant 0 : index
    %c0_6 = arith.constant 0 : index
    %4 = vector.load %arg3[%c0_5, %c0_6] : memref<1x128xf32, #tpu.memory_space<vmem>>, vector<1x128xf32>
    %5 = vector.broadcast %4 : vector<1x128xf32> to vector<8x128xf32>
    %6 = arith.addf %3, %5 : vector<8x128xf32>
    %cst_7 = arith.constant 0.00999999977 : f32
    %7 = vector.broadcast %cst_7 : f32 to vector<8x128xf32>
    %8 = arith.mulf %7, %6 : vector<8x128xf32>
    %9 = arith.maximumf %6, %8 : vector<8x128xf32>
    %cst_8 = arith.constant dense<0.000000e+00> : vector<8x128xf32>
    %10 = tpu.matmul %9, %2, %cst_8 {dimension_numbers = #tpu.dot_dimension_numbers<[1], [0], [0], [1], [0, 0, 1, 1], [], []>} : vector<8x128xf32>, vector<128x128xf32>, vector<8x128xf32> -> vector<8x128xf32>
    %c0_9 = arith.constant 0 : index
    %c0_10 = arith.constant 0 : index
    %11 = vector.load %arg5[%c0_9, %c0_10] : memref<1x128xf32, #tpu.memory_space<vmem>>, vector<1x128xf32>
    %12 = vector.broadcast %11 : vector<1x128xf32> to vector<8x128xf32>
    %13 = arith.addf %10, %12 : vector<8x128xf32>
    %c0_11 = arith.constant 0 : index
    %c0_12 = arith.constant 0 : index
    %14 = vector.load %arg6[%c0_11, %c0_12] : memref<8x128xf32, #tpu.memory_space<vmem>>, vector<8x128xf32>
    tpu.vector_store %arg6[%c0_11, %c0_12], %13 {strides = array<i32>} : memref<8x128xf32, #tpu.memory_space<vmem>>, vector<8x128xf32>,
    return
  }
  func.func @transform_0(%arg0: i32) -> (i32, i32) {
    %c0_i32 = arith.constant 0 : i32
    %c0_i32_0 = arith.constant 0 : i32
    return %arg0, %c0_i32 : i32, i32
  }
  func.func @transform_1(%arg0: i32) -> (i32, i32) {
    %c0_i32 = arith.constant 0 : i32
    %c0_i32_0 = arith.constant 0 : i32
    %c0_i32_1 = arith.constant 0 : i32
    return %c0_i32, %c0_i32_0 : i32, i32
  }
  func.func @transform_2(%arg0: i32) -> (i32, i32) {
    %c0_i32 = arith.constant 0 : i32
    %c0_i32_0 = arith.constant 0 : i32
    %c0_i32_1 = arith.constant 0 : i32
    return %c0_i32, %c0_i32_0 : i32, i32
  }
  func.func @transform_3(%arg0: i32) -> (i32, i32) {
    %c0_i32 = arith.constant 0 : i32
    %c0_i32_0 = arith.constant 0 : i32
    %c0_i32_1 = arith.constant 0 : i32
    return %c0_i32, %c0_i32_0 : i32, i32
  }
  func.func @transform_4(%arg0: i32) -> (i32, i32) {
    %c0_i32 = arith.constant 0 : i32
    %c0_i32_0 = arith.constant 0 : i32
    %c0_i32_1 = arith.constant 0 : i32
    return %c0_i32, %c0_i32_0 : i32, i32
  }
  func.func @transform_5(%arg0: i32) -> (i32, i32) {
    %c0_i32 = arith.constant 0 : i32
    %c0_i32_0 = arith.constant 0 : i32
    return %arg0, %c0_i32 : i32, i32
  }
}

</mosaic_0001>

<llo_original>
// kernel: tpu_custom_call.1
$region0: #{tpu_custom_call.1}
  #allocation0 [shape = 'u32[]', space=smem, size = 0x4, offset = 0x4, fixed_abs, tag = 'smem constant byte address 0x4 - core index']
  #allocation1 [shape = 'u32[144,128]{1,0:T(1,128)}', space=vmem, size = 0x12000, scoped, tag = 'internal scratch']
  %s0 = inlined_call_operand.hbm [shape: f32[8,128], index: 0, kind: input, shape index: {}]
  %s1 = inlined_call_operand.hbm [shape: f32[128,128], index: 1, kind: input, shape index: {}]
  %s2 = inlined_call_operand.vmem [shape: f32[1,128], index: 2, kind: input, shape index: {}]
  %s3 = inlined_call_operand.hbm [shape: f32[128,128], index: 3, kind: input, shape index: {}]
  %s4 = inlined_call_operand.vmem [shape: f32[1,128], index: 4, kind: input, shape index: {}]
  %s5 = inlined_call_operand.hbm [shape: f32[8,128], index: 5, kind: output, shape index: {}]
  %s6 = sld [smem:[#allocation0]]
  $region42: #{tpu_custom_call.1} parent=0
    _
  %s8 = ssub.s32 1, %s6
  %s9 = scalar_select 0, %s8, %s6
  $region1: #{tpu_custom_call.1} parent=0
    #allocation2 [shape = 'u8[4096]{0}', space=vmem, size = 0x1000, scoped, tag = 'input window, operand 0, single buffered']
    #allocation3 [shape = 's32[1]{0}', space=sflag, size = 0x4, scoped, tag = 'scoped memory for tpu_custom_call.1']
    #allocation4 [shape = 's32[1]{0}', space=sflag, size = 0x4, scoped, tag = 'scoped memory for tpu_custom_call.1']
    #allocation5 [shape = 'u8[65536]{0}', space=vmem, size = 0x10000, scoped, tag = 'input window, operand 1, single buffered']
    #allocation6 [shape = 's32[1]{0}', space=sflag, size = 0x4, scoped, tag = 'scoped memory for tpu_custom_call.1']
    #allocation7 [shape = 'u8[65536]{0}', space=vmem, size = 0x10000, scoped, tag = 'input window, operand 3, single buffered']
    #allocation8 [shape = 'u8[4096]{0}', space=vmem, size = 0x1000, scoped, tag = 'output window, operand 0, single buffered']
    %10 = vsyncpa [#allocation3], 0
    %11 = vsyncpa [#allocation6], 0
    %12 = vsyncpa [#allocation4], 0
    // Predicated region
    $region2: #{tpu_custom_call.1} parent=1 // pred_check
      _
    $region3: #{tpu_custom_call.1} parent=1 // pred_check_branch
      %14 = sbr.rel (0) target = $region5
    $region4: #{tpu_custom_call.1} parent=1 // pred_region
      %s16 = ssub.s32 128, 128
      %17 = vsyncadd [#allocation3], %s16
      %s19 = sshll.u32 [#allocation2], 4
      %s20 = int_to_ptr.vmem [resolvable:$true] %s19
      %22 = dma.hbm_to_vmem [thread:$0]  %s0, 128, %s20, [#allocation3]
    $region5: #{tpu_custom_call.1} parent=1 // pred_fallthru
      _
    // Predicated region
    $region6: #{tpu_custom_call.1} parent=1 // pred_check
      _
    $region7: #{tpu_custom_call.1} parent=1 // pred_check_branch
      %24 = sbr.rel (0) target = $region9
    $region8: #{tpu_custom_call.1} parent=1 // pred_region
      %s26 = ssub.s32 2048, 2048
      %27 = vsyncadd [#allocation6], %s26
      %s28 = sshll.u32 [#allocation5], 4
      %s29 = int_to_ptr.vmem [resolvable:$true] %s28
      %34 = dma.hbm_to_vmem [thread:$0]  %s1, 2048, %s29, [#allocation6], 128, 128, 8
    $region9: #{tpu_custom_call.1} parent=1 // pred_fallthru
      _
    // Predicated region
    $region10: #{tpu_custom_call.1} parent=1 // pred_check
      _
    $region11: #{tpu_custom_call.1} parent=1 // pred_check_branch
      %36 = sbr.rel (0) target = $region13
    $region12: #{tpu_custom_call.1} parent=1 // pred_region
      _
    $region13: #{tpu_custom_call.1} parent=1 // pred_fallthru
      _
    // Predicated region
    $region14: #{tpu_custom_call.1} parent=1 // pred_check
      _
    $region15: #{tpu_custom_call.1} parent=1 // pred_check_branch
      %38 = sbr.rel (0) target = $region17
    $region16: #{tpu_custom_call.1} parent=1 // pred_region
      %s40 = ssub.s32 2048, 2048
      %41 = vsyncadd [#allocation6], %s40
      %s42 = sshll.u32 [#allocation7], 4
      %s43 = int_to_ptr.vmem [resolvable:$true] %s42
      %48 = dma.hbm_to_vmem [thread:$0]  %s3, 2048, %s43, [#allocation6], 128, 128, 8
    $region17: #{tpu_custom_call.1} parent=1 // pred_fallthru
      _
    // Predicated region
    $region18: #{tpu_custom_call.1} parent=1 // pred_check
      _
    $region19: #{tpu_custom_call.1} parent=1 // pred_check_branch
      %50 = sbr.rel (0) target = $region21
    $region20: #{tpu_custom_call.1} parent=1 // pred_region
      _
    $region21: #{tpu_custom_call.1} parent=1 // pred_fallthru
      _
    // Predicated region
    $region22: #{tpu_custom_call.1} parent=1 // pred_check
      _
    $region23: #{tpu_custom_call.1} parent=1 // pred_check_branch
      %52 = sbr.rel (0) target = $region25
    $region24: #{tpu_custom_call.1} parent=1 // pred_region
      %53 = dma.done [#allocation3], 128
    $region25: #{tpu_custom_call.1} parent=1 // pred_fallthru
      _
    // Predicated region
    $region26: #{tpu_custom_call.1} parent=1 // pred_check
      _
    $region27: #{tpu_custom_call.1} parent=1 // pred_check_branch
      %55 = sbr.rel (0) target = $region29
    $region28: #{tpu_custom_call.1} parent=1 // pred_region
      %56 = dma.done [#allocation6], 2048
    $region29: #{tpu_custom_call.1} parent=1 // pred_fallthru
      _
    // Predicated region
    $region30: #{tpu_custom_call.1} parent=1 // pred_check
      _
    $region31: #{tpu_custom_call.1} parent=1 // pred_check_branch
      %58 = sbr.rel (0) target = $region33
    $region32: #{tpu_custom_call.1} parent=1 // pred_region
      %59 = dma.done [#allocation6], 2048
    $region33: #{tpu_custom_call.1} parent=1 // pred_fallthru
      _
    %v60 = vld [vmem:[#allocation2] sm:$0xff]
    %v61 = vld [vmem:[#allocation5] sm:$0xff]
    %v62 = vld [vmem:[#allocation5 + $0x8] sm:$0xff]
    %v63 = vld [vmem:[#allocation5 + $0x10] sm:$0xff]
    %v64 = vld [vmem:[#allocation5 + $0x18] sm:$0xff]
    %v65 = vld [vmem:[#allocation5 + $0x20] sm:$0xff]
    %v66 = vld [vmem:[#allocation5 + $0x28] sm:$0xff]
    %v67 = vld [vmem:[#allocation5 + $0x30] sm:$0xff]
    %v68 = vld [vmem:[#allocation5 + $0x38] sm:$0xff]
    %v69 = vld [vmem:[#allocation5 + $0x40] sm:$0xff]
    %v70 = vld [vmem:[#allocation5 + $0x48] sm:$0xff]
    %v71 = vld [vmem:[#allocation5 + $0x50] sm:$0xff]
    %v72 = vld [vmem:[#allocation5 + $0x58] sm:$0xff]
    %v73 = vld [vmem:[#allocation5 + $0x60] sm:$0xff]
    %v74 = vld [vmem:[#allocation5 + $0x68] sm:$0xff]
    %v75 = vld [vmem:[#allocation5 + $0x70] sm:$0xff]
    %v76 = vld [vmem:[#allocation5 + $0x78] sm:$0xff]
    %v77 = vld [vmem:[#allocation7] sm:$0xff]
    %v78 = vld [vmem:[#allocation7 + $0x8] sm:$0xff]
    %v79 = vld [vmem:[#allocation7 + $0x10] sm:$0xff]
    %v80 = vld [vmem:[#allocation7 + $0x18] sm:$0xff]
    %v81 = vld [vmem:[#allocation7 + $0x20] sm:$0xff]
    %v82 = vld [vmem:[#allocation7 + $0x28] sm:$0xff]
    %v83 = vld [vmem:[#allocation7 + $0x30] sm:$0xff]
    %v84 = vld [vmem:[#allocation7 + $0x38] sm:$0xff]
    %v85 = vld [vmem:[#allocation7 + $0x40] sm:$0xff]
    %v86 = vld [vmem:[#allocation7 + $0x48] sm:$0xff]
    %v87 = vld [vmem:[#allocation7 + $0x50] sm:$0xff]
    %v88 = vld [vmem:[#allocation7 + $0x58] sm:$0xff]
    %v89 = vld [vmem:[#allocation7 + $0x60] sm:$0xff]
    %v90 = vld [vmem:[#allocation7 + $0x68] sm:$0xff]
    %v91 = vld [vmem:[#allocation7 + $0x70] sm:$0xff]
    %v92 = vld [vmem:[#allocation7 + $0x78] sm:$0xff]
    %v93 = vld [vmem:[%s2] sm:$0x1]
    %v95 = vlaneseq
    %v96 = vshrl.u32 %v95, 7
    %v97 = vsub.s32 0, %v96
    %v98 = vrot.slane %v93, %v97
    %100 = vmatprep.subr.mxu0 0.0
    %101 = vmatpush1.msra.mxu0 %v61
    %102 = vmatprep.subr.mxu0 0.0
    %103 = vmatpush1.msra.mxu0 %v62
    %104 = vmatprep.subr.mxu0 0.0
    %105 = vmatpush1.msra.mxu0 %v63
    %106 = vmatprep.subr.mxu0 0.0
    %107 = vmatpush1.msra.mxu0 %v64
    %108 = vmatprep.subr.mxu0 0.0
    %109 = vmatpush1.msra.mxu0 %v65
    %110 = vmatprep.subr.mxu0 0.0
    %111 = vmatpush1.msra.mxu0 %v66
    %112 = vmatprep.subr.mxu0 0.0
    %113 = vmatpush1.msra.mxu0 %v67
    %114 = vmatprep.subr.mxu0 0.0
    %115 = vmatpush1.msra.mxu0 %v68
    %116 = vmatprep.subr.mxu0 0.0
    %117 = vmatpush1.msra.mxu0 %v69
    %118 = vmatprep.subr.mxu0 0.0
    %119 = vmatpush1.msra.mxu0 %v70
    %120 = vmatprep.subr.mxu0 0.0
    %121 = vmatpush1.msra.mxu0 %v71
    %122 = vmatprep.subr.mxu0 0.0
    %123 = vmatpush1.msra.mxu0 %v72
    %124 = vmatprep.subr.mxu0 0.0
    %125 = vmatpush1.msra.mxu0 %v73
    %126 = vmatprep.subr.mxu0 0.0
    %127 = vmatpush1.msra.mxu0 %v74
    %128 = vmatprep.subr.mxu0 0.0
    %129 = vmatpush1.msra.mxu0 %v75
    %130 = vmatprep.subr.mxu0 0.0
    %131 = vmatpush1.msra.mxu0 %v76
    %132 = vmatprep.subr.mxu0 0.0
    %133 = vmatpush1.msra.mxu0 0.0
    %134 = vmatprep.subr.mxu0 0.0
    %135 = vmatpush1.msra.mxu0 0.0
    %136 = vmatprep.subr.mxu0 0.0
    %137 = vmatpush1.msra.mxu0 0.0
    %138 = vmatprep.subr.mxu0 0.0
    %139 = vmatpush1.msra.mxu0 0.0
    %140 = vmatprep.subr.mxu0 0.0
    %141 = vmatpush1.msra.mxu0 0.0
    %142 = vmatprep.subr.mxu0 0.0
    %143 = vmatpush1.msra.mxu0 0.0
    %144 = vmatprep.subr.mxu0 0.0
    %145 = vmatpush1.msra.mxu0 0.0
    %146 = vmatprep.subr.mxu0 0.0
    %147 = vmatpush1.msra.mxu0 0.0
    %148 = vmatprep.subr.mxu0 0.0
    %149 = vmatpush1.msra.mxu0 0.0
    %150 = vmatprep.subr.mxu0 0.0
    %151 = vmatpush1.msra.mxu0 0.0
    %152 = vmatprep.subr.mxu0 0.0
    %153 = vmatpush1.msra.mxu0 0.0
    %154 = vmatprep.subr.mxu0 0.0
    %155 = vmatpush1.msra.mxu0 0.0
    %156 = vmatprep.subr.mxu0 0.0
    %157 = vmatpush1.msra.mxu0 0.0
    %158 = vmatprep.subr.mxu0 0.0
    %159 = vmatpush1.msra.mxu0 0.0
    %160 = vmatprep.subr.mxu0 0.0
    %161 = vmatpush1.msra.mxu0 0.0
    %162 = vmatprep.subr.mxu0 0.0
    %163 = vmatpush1.msra.mxu0 0.0
    %164 = vmatprep.mubr.f32.mxu0 0.0
    %165 = vmatmul.mubr.f32.gmra.mrb[0].mxu0 %v60
    %v166 = vpop.f32.mrb[0].mxu0
    %v167 = vadd.f32 %v98, %v166
    %v168 = vpop.f32.mrb[0].mxu0
    %169 = vdwg.mxu0
    %v170 = vmul.f32 %v167, 0.01
    %v171 = vmax.f32 %v167, %v170
    %v172 = vld [vmem:[%s4] sm:$0x1]
    %v174 = vlaneseq
    %v175 = vshrl.u32 %v174, 7
    %v176 = vsub.s32 0, %v175
    %v177 = vrot.slane %v172, %v176
    %179 = vmatprep.subr.mxu0 0.0
    %180 = vmatpush1.msra.mxu0 %v77
    %181 = vmatprep.subr.mxu0 0.0
    %182 = vmatpush1.msra.mxu0 %v78
    %183 = vmatprep.subr.mxu0 0.0
    %184 = vmatpush1.msra.mxu0 %v79
    %185 = vmatprep.subr.mxu0 0.0
    %186 = vmatpush1.msra.mxu0 %v80
    %187 = vmatprep.subr.mxu0 0.0
    %188 = vmatpush1.msra.mxu0 %v81
    %189 = vmatprep.subr.mxu0 0.0
    %190 = vmatpush1.msra.mxu0 %v82
    %191 = vmatprep.subr.mxu0 0.0
    %192 = vmatpush1.msra.mxu0 %v83
    %193 = vmatprep.subr.mxu0 0.0
    %194 = vmatpush1.msra.mxu0 %v84
    %195 = vmatprep.subr.mxu0 0.0
    %196 = vmatpush1.msra.mxu0 %v85
    %197 = vmatprep.subr.mxu0 0.0
    %198 = vmatpush1.msra.mxu0 %v86
    %199 = vmatprep.subr.mxu0 0.0
    %200 = vmatpush1.msra.mxu0 %v87
    %201 = vmatprep.subr.mxu0 0.0
    %202 = vmatpush1.msra.mxu0 %v88
    %203 = vmatprep.subr.mxu0 0.0
    %204 = vmatpush1.msra.mxu0 %v89
    %205 = vmatprep.subr.mxu0 0.0
    %206 = vmatpush1.msra.mxu0 %v90
    %207 = vmatprep.subr.mxu0 0.0
    %208 = vmatpush1.msra.mxu0 %v91
    %209 = vmatprep.subr.mxu0 0.0
    %210 = vmatpush1.msra.mxu0 %v92
    %211 = vmatprep.subr.mxu0 0.0
    %212 = vmatpush1.msra.mxu0 0.0
    %213 = vmatprep.subr.mxu0 0.0
    %214 = vmatpush1.msra.mxu0 0.0
    %215 = vmatprep.subr.mxu0 0.0
    %216 = vmatpush1.msra.mxu0 0.0
    %217 = vmatprep.subr.mxu0 0.0
    %218 = vmatpush1.msra.mxu0 0.0
    %219 = vmatprep.subr.mxu0 0.0
    %220 = vmatpush1.msra.mxu0 0.0
    %221 = vmatprep.subr.mxu0 0.0
    %222 = vmatpush1.msra.mxu0 0.0
    %223 = vmatprep.subr.mxu0 0.0
    %224 = vmatpush1.msra.mxu0 0.0
    %225 = vmatprep.subr.mxu0 0.0
    %226 = vmatpush1.msra.mxu0 0.0
    %227 = vmatprep.subr.mxu0 0.0
    %228 = vmatpush1.msra.mxu0 0.0
    %229 = vmatprep.subr.mxu0 0.0
    %230 = vmatpush1.msra.mxu0 0.0
    %231 = vmatprep.subr.mxu0 0.0
    %232 = vmatpush1.msra.mxu0 0.0
    %233 = vmatprep.subr.mxu0 0.0
    %234 = vmatpush1.msra.mxu0 0.0
    %235 = vmatprep.subr.mxu0 0.0
    %236 = vmatpush1.msra.mxu0 0.0
    %237 = vmatprep.subr.mxu0 0.0
    %238 = vmatpush1.msra.mxu0 0.0
    %239 = vmatprep.subr.mxu0 0.0
    %240 = vmatpush1.msra.mxu0 0.0
    %241 = vmatprep.subr.mxu0 0.0
    %242 = vmatpush1.msra.mxu0 0.0
    %243 = vmatprep.mubr.f32.mxu0 0.0
    %244 = vmatmul.mubr.f32.gmra.mrb[0].mxu0 %v171
    %v245 = vpop.f32.mrb[0].mxu0
    %v246 = vadd.f32 %v177, %v245
    %v247 = vpop.f32.mrb[0].mxu0
    %248 = vdwg.mxu0
    %249 = vst [vmem:[#allocation8] sm:$0xff] %v246
    // Predicated region
    $region34: #{tpu_custom_call.1} parent=1 // pred_check
      _
    $region35: #{tpu_custom_call.1} parent=1 // pred_check_branch
      %251 = sbr.rel (0) target = $region37
    $region36: #{tpu_custom_call.1} parent=1 // pred_region
      %s253 = ssub.s32 128, 128
      %254 = vsyncadd [#allocation4], %s253
      %s256 = sshll.u32 [#allocation8], 4
      %s257 = int_to_ptr.vmem [resolvable:$true] %s256
      %259 = dma.vmem_to_hbm [thread:$0]  %s257, 128, %s5, [#allocation4]
    $region37: #{tpu_custom_call.1} parent=1 // pred_fallthru
      _
    // Predicated region
    $region38: #{tpu_custom_call.1} parent=1 // pred_check
      _
    $region39: #{tpu_custom_call.1} parent=1 // pred_check_branch
      %261 = sbr.rel (0) target = $region41
    $region40: #{tpu_custom_call.1} parent=1 // pred_region
      %262 = dma.done [#allocation4], 128
    $region41: #{tpu_custom_call.1} parent=1 // pred_fallthru
      _
    %263 = vsyncpa [#allocation3], 1
    %264 = vsyncpa [#allocation6], 1
    %265 = vsyncpa [#allocation4], 1

</llo_original>
